<compile_context>
chip_gen: v5e
topology: v5e:2x2
jax: 0.10.0
libtpu: 0.0.40
codegen_flags: <defaults>
</compile_context>

<pallas_src>
import functools
import math

import jax
import jax.numpy as jnp
from jax.experimental import pallas as pl
from jax.experimental.pallas import tpu as pltpu


# ----------------------------- kernel body -----------------------------------

def _welkir_output_kernel(x_ref, w_ref, b_ref, res_ref, g_ref, beta_ref,
                          o_ref, acc_ref, *, eps):
    # x_ref: (tm, tk)   w_ref: (tk, H)   b_ref/g_ref/beta_ref: (1, H)
    # res_ref: (tm, H)  o_ref: (tm, H)   acc_ref: (tm, H) f32 scratch
    k = pl.program_id(1)

    prod = jnp.dot(x_ref[...], w_ref[...], preferred_element_type=jnp.float32)

    @pl.when(k == 0)
    def _():
        # Direct write on the first K step: saves a full (tm, H) zero-store
        # plus the read it forces on the first accumulate.
        acc_ref[...] = prod

    @pl.when(k > 0)
    def _():
        acc_ref[...] += prod

    @pl.when(k == pl.num_programs(1) - 1)
    def _():
        y = acc_ref[...] + b_ref[...].astype(jnp.float32)
        # Dropout: identity in eval/inference forward.
        # TODO(synk): training-mode dropout would need pltpu.prng_seed /
        # pltpu.prng_random_bits masking here.
        y = y + res_ref[...].astype(jnp.float32)
        # LayerNorm over the hidden (last) dimension.
        mean = jnp.mean(y, axis=-1, keepdims=True)
        d = y - mean
        var = jnp.mean(d * d, axis=-1, keepdims=True)
        inv = jax.lax.rsqrt(var + eps)
        out = d * inv * g_ref[...].astype(jnp.float32) \
              + beta_ref[...].astype(jnp.float32)
        # Note: garbage rows of a ragged last M tile may produce NaN here; their
        # stores are out-of-bounds and dropped by Pallas, so they never reach HBM.
        o_ref[...] = out.astype(o_ref.dtype)


# --------------------------- tiling heuristics --------------------------------

def _round_up(x, m):
    return (x + m - 1) // m * m


def _sublane_packing(dtype):
    itemsize = jnp.dtype(dtype).itemsize
    if itemsize >= 4:
        return 8
    if itemsize == 2:
        return 16
    return 32


def _vmem_capacity_bytes():
    try:
        cap = int(getattr(pltpu.get_tpu_info(), "vmem_capacity_bytes", 0))
        if cap > 0:
            return cap
    except Exception:
        pass
    return 64 * 1024 * 1024  # conservative: v7x-size VMEM, safe everywhere


def _tm_target():
    try:
        kind = jax.devices()[0].device_kind.lower()
    except Exception:
        return 512
    if "v6" in kind:
        return 1024      # v6e: needs ~700 FLOP/byte on the weight stream
    if "v5" in kind:
        return 256       # v5e: ~240 FLOP/byte threshold; 256 is roofline-adequate
    return 512           # v7x / unknown: 3.2 TB/s HBM -> 384-512 is enough


def _num_cores_hint():
    try:
        kind = jax.devices()[0].device_kind.lower()
        if "v7" in kind:
            return 2
    except Exception:
        pass
    return 1


def _largest_tk_divisor(I, tk_max):
    """Largest multiple of 128 that divides I and is <= tk_max (or None)."""
    best = None
    t = 128
    while t <= min(I, tk_max):
        if I % t == 0:
            best = t
        t += 128
    return best


def _vmem_bytes(tm, tk, H, x_b, w_b, r_b, o_b):
    return (2 * tm * tk * x_b        # x tile, double-buffered
            + 2 * tk * H * w_b       # weight tile, double-buffered
            + 2 * tm * H * r_b       # residual tile, double-buffered
            + 2 * tm * H * o_b       # output tile, double-buffered
            + tm * H * 4             # f32 accumulator scratch
            + 3 * 2 * H * 4)         # bias/gamma/beta (1, H) blocks


def _choose_tiles(M, I, H, x_dtype, w_dtype, r_dtype, o_dtype, tm_req, tk_req):
    x_b = jnp.dtype(x_dtype).itemsize
    w_b = jnp.dtype(w_dtype).itemsize
    r_b = jnp.dtype(r_dtype).itemsize
    o_b = jnp.dtype(o_dtype).itemsize

    cap = _vmem_capacity_bytes()
    budget = int(cap * 0.70)

    # --- K tile: never ragged (OOB in the reduction dim is unsafe). ---
    if 2 * I * H * w_b <= int(0.6 * budget):
        # Whole weight resident: constant block index -> single HBM fetch total.
        tk_eff = I
    else:
        tk_eff = _largest_tk_divisor(I, tk_req)
        if tk_eff is None:
            # TODO(synk): if I is not a multiple of 128 and too big to be
            # resident, zero-pad K host-side; for now fall back to full I.
            tk_eff = I

    # --- M tile: generation target, sublane-packed, shrunk to fit VMEM. ---
    packing = _sublane_packing(x_dtype)
    tm_target = min(tm_req, _tm_target())
    tm_eff = min(_round_up(tm_target, packing), _round_up(M, packing))
    tm_eff = max(tm_eff, packing)
    while tm_eff > packing and _vmem_bytes(tm_eff, tk_eff, H,
                                           x_b, w_b, r_b, o_b) > budget:
        tm_eff = max(packing, _round_up(tm_eff // 2, packing))

    # v7x megacore: make sure the parallel M axis has >= 2 tiles when possible.
    if (_num_cores_hint() >= 2 and pl.cdiv(M, tm_eff) < 2
            and M > 2 * packing):
        tm_eff = max(packing, _round_up(pl.cdiv(M, 2), packing))

    est = _vmem_bytes(tm_eff, tk_eff, H, x_b, w_b, r_b, o_b)
    vmem_limit = int(min(cap * 0.88,
                         max(1.4 * est + 4 * 1024 * 1024, 24 * 1024 * 1024)))
    return tm_eff, tk_eff, vmem_limit


# ------------------------------- wrapper --------------------------------------

def welkir_output(hidden_states, input_tensor, weight, bias, gamma, beta,
                  *, eps=1e-12, tm=1024, tk=512):
    """Fused dense + (dropout=identity) + residual + LayerNorm.

    hidden_states: [B, S, I]; input_tensor: [B, S, H];
    weight: [I, H] (transposed vs. PyTorch's [H, I]); bias/gamma/beta: [H].
    """
    B, S, I = hidden_states.shape
    H = input_tensor.shape[-1]
    assert weight.shape == (I, H)
    M = B * S

    x2d = hidden_states.reshape(M, I)
    r2d = input_tensor.reshape(M, H)
    b2d = bias.reshape(1, H)
    g2d = gamma.reshape(1, H)
    be2d = beta.reshape(1, H)

    out_dtype = hidden_states.dtype
    tm_eff, tk_eff, vmem_limit = _choose_tiles(
        M, I, H, x2d.dtype, weight.dtype, r2d.dtype, out_dtype, tm, tk)

    # Ragged last M tile is handled by Pallas (no host pad / output slice).
    grid = (pl.cdiv(M, tm_eff), I // tk_eff)

    kernel = functools.partial(_welkir_output_kernel, eps=float(eps))

    out = pl.pallas_call(
        kernel,
        out_shape=jax.ShapeDtypeStruct((M, H), out_dtype),
        grid_spec=pltpu.PrefetchScalarGridSpec(
            num_scalar_prefetch=0,
            grid=grid,
            in_specs=[
                pl.BlockSpec((tm_eff, tk_eff), lambda i, k: (i, k)),  # x
                pl.BlockSpec((tk_eff, H), lambda i, k: (k, 0)),       # weight
                pl.BlockSpec((1, H), lambda i, k: (0, 0)),            # bias
                pl.BlockSpec((tm_eff, H), lambda i, k: (i, 0)),       # residual
                pl.BlockSpec((1, H), lambda i, k: (0, 0)),            # gamma
                pl.BlockSpec((1, H), lambda i, k: (0, 0)),            # beta
            ],
            out_specs=pl.BlockSpec((tm_eff, H), lambda i, k: (i, 0)),
            scratch_shapes=[pltpu.VMEM((tm_eff, H), jnp.float32)],
        ),
        compiler_params=pltpu.CompilerParams(
            dimension_semantics=("parallel", "arbitrary"),
            vmem_limit_bytes=vmem_limit,
        ),
    )(x2d, weight, b2d, r2d, g2d, be2d)

    return out.reshape(B, S, H)


# --------------------------------- demo ----------------------------------------

if __name__ == "__main__":
    # Small config consistent with the module: intermediate_size=128, hidden=32.
    # (Production shapes should have H % 128 == 0 for lane-dense stores.)
    B, S, I, H = 2, 8, 128, 32
    eps = 1e-12

    key = jax.random.PRNGKey(0)
    kx, kr, kw, kb, kg, kbe = jax.random.split(key, 6)

    hidden_states = jax.random.normal(kx, (B, S, I), dtype=jnp.float32)
    input_tensor = jax.random.normal(kr, (B, S, H), dtype=jnp.float32)

    # "nn.Linear"-style init, stored as [I, H] (transposed vs. PyTorch's [H, I]).
    bound = 1.0 / math.sqrt(I)
    weight = jax.random.uniform(kw, (I, H), minval=-bound, maxval=bound,
                                dtype=jnp.float32)
    bias = jax.random.uniform(kb, (H,), minval=-bound, maxval=bound,
                              dtype=jnp.float32)
    gamma = 1.0 + 0.1 * jax.random.normal(kg, (H,), dtype=jnp.float32)
    beta = 0.1 * jax.random.normal(kbe, (H,), dtype=jnp.float32)

    out = welkir_output(hidden_states, input_tensor, weight, bias, gamma, beta,
                        eps=eps)
    out = jax.block_until_ready(out)

    # Reference (plain JAX): dense + (dropout=identity) + residual + LayerNorm.
    y = hidden_states.reshape(B * S, I) @ weight + bias
    y = y + input_tensor.reshape(B * S, H)
    mean = jnp.mean(y, axis=-1, keepdims=True)
    var = jnp.mean((y - mean) ** 2, axis=-1, keepdims=True)
    ref = (y - mean) * jax.lax.rsqrt(var + eps) * gamma + beta
    ref = ref.reshape(B, S, H)

    assert out.shape == (B, S, H)
    assert jnp.allclose(out, ref, atol=1e-5, rtol=1e-5), "mismatch vs reference"

    print("KERNEL_OK")
</pallas_src>

<mosaic_0001>
module attributes {stable_mosaic.version = 11 : i64} {
  func.func @_welkir_output_kernel(%arg0: i32, %arg1: i32, %arg2: memref<16x128xf32, #tpu.memory_space<vmem>>, %arg3: memref<128x32xf32, #tpu.memory_space<vmem>>, %arg4: memref<1x32xf32, #tpu.memory_space<vmem>>, %arg5: memref<16x32xf32, #tpu.memory_space<vmem>>, %arg6: memref<1x32xf32, #tpu.memory_space<vmem>>, %arg7: memref<1x32xf32, #tpu.memory_space<vmem>>, %arg8: memref<16x32xf32, #tpu.memory_space<vmem>>, %arg9: memref<16x32xf32, #tpu.memory_space<vmem>>) attributes {dimension_semantics = [#tpu.dimension_semantics<parallel>, #tpu.dimension_semantics<arbitrary>], iteration_bounds = array<i64: 1, 1>, scalar_prefetch = 0 : i64, scratch_operands = 1 : i64, tpu.core_type = #tpu.core_type<tc>, window_params = [{transform_indices = @transform_0, window_bounds = array<i64: 16, 128>}, {transform_indices = @transform_1, window_bounds = array<i64: 128, 32>}, {pipeline_mode = #tpu.pipeline_mode<synchronous>, transform_indices = @transform_2, window_bounds = array<i64: 1, 32>}, {transform_indices = @transform_3, window_bounds = array<i64: 16, 32>}, {pipeline_mode = #tpu.pipeline_mode<synchronous>, transform_indices = @transform_4, window_bounds = array<i64: 1, 32>}, {pipeline_mode = #tpu.pipeline_mode<synchronous>, transform_indices = @transform_5, window_bounds = array<i64: 1, 32>}, {transform_indices = @transform_6, window_bounds = array<i64: 16, 32>}]} {
    %c0 = arith.constant 0 : index
    %c0_0 = arith.constant 0 : index
    %0 = vector.load %arg2[%c0, %c0_0] : memref<16x128xf32, #tpu.memory_space<vmem>>, vector<16x128xf32>
    %c0_1 = arith.constant 0 : index
    %c0_2 = arith.constant 0 : index
    %1 = vector.load %arg3[%c0_1, %c0_2] : memref<128x32xf32, #tpu.memory_space<vmem>>, vector<128x32xf32>
    %cst = arith.constant dense<0.000000e+00> : vector<16x32xf32>
    %2 = tpu.matmul %0, %1, %cst {dimension_numbers = #tpu.dot_dimension_numbers<[1], [0], [0], [1], [0, 0, 1, 1], [], []>} : vector<16x128xf32>, vector<128x32xf32>, vector<16x32xf32> -> vector<16x32xf32>
    %c0_i32 = arith.constant 0 : i32
    %3 = arith.cmpi eq, %arg1, %c0_i32 : i32
    %4 = arith.extui %3 : i1 to i32
    %c0_i32_3 = arith.constant 0 : i32
    %5 = arith.cmpi ne, %4, %c0_i32_3 : i32
    scf.if %5 {
      %c0_8 = arith.constant 0 : index
      %c0_9 = arith.constant 0 : index
      %12 = vector.load %arg9[%c0_8, %c0_9] : memref<16x32xf32, #tpu.memory_space<vmem>>, vector<16x32xf32>
      tpu.vector_store %arg9[%c0_8, %c0_9], %2 {strides = array<i32>} : memref<16x32xf32, #tpu.memory_space<vmem>>, vector<16x32xf32>,
    } else {
    }
    %c0_i32_4 = arith.constant 0 : i32
    %6 = arith.cmpi sgt, %arg1, %c0_i32_4 : i32
    %7 = arith.extui %6 : i1 to i32
    %c0_i32_5 = arith.constant 0 : i32
    %8 = arith.cmpi ne, %7, %c0_i32_5 : i32
    scf.if %8 {
      %c0_8 = arith.constant 0 : index
      %c0_9 = arith.constant 0 : index
      %12 = vector.load %arg9[%c0_8, %c0_9] : memref<16x32xf32, #tpu.memory_space<vmem>>, vector<16x32xf32>
      %13 = arith.addf %12, %2 : vector<16x32xf32>
      %c0_10 = arith.constant 0 : index
      %c0_11 = arith.constant 0 : index
      %14 = vector.load %arg9[%c0_10, %c0_11] : memref<16x32xf32, #tpu.memory_space<vmem>>, vector<16x32xf32>
      tpu.vector_store %arg9[%c0_10, %c0_11], %13 {strides = array<i32>} : memref<16x32xf32, #tpu.memory_space<vmem>>, vector<16x32xf32>,
    } else {
    }
    %c0_i32_6 = arith.constant 0 : i32
    %9 = arith.cmpi eq, %arg1, %c0_i32_6 : i32
    %10 = arith.extui %9 : i1 to i32
    %c0_i32_7 = arith.constant 0 : i32
    %11 = arith.cmpi ne, %10, %c0_i32_7 : i32
    scf.if %11 {
      %c0_8 = arith.constant 0 : index
      %c0_9 = arith.constant 0 : index
      %12 = vector.load %arg9[%c0_8, %c0_9] : memref<16x32xf32, #tpu.memory_space<vmem>>, vector<16x32xf32>
      %c0_10 = arith.constant 0 : index
      %c0_11 = arith.constant 0 : index
      %13 = vector.load %arg4[%c0_10, %c0_11] : memref<1x32xf32, #tpu.memory_space<vmem>>, vector<1x32xf32>
      %14 = vector.broadcast %13 : vector<1x32xf32> to vector<16x32xf32>
      %15 = arith.addf %12, %14 : vector<16x32xf32>
      %c0_12 = arith.constant 0 : index
      %c0_13 = arith.constant 0 : index
      %16 = vector.load %arg5[%c0_12, %c0_13] : memref<16x32xf32, #tpu.memory_space<vmem>>, vector<16x32xf32>
      %17 = arith.addf %15, %16 : vector<16x32xf32>
      %cst_14 = arith.constant dense<0.000000e+00> : vector<16xf32>
      %18 = vector.multi_reduction <add>, %17, %cst_14 [1] : vector<16x32xf32> to vector<16xf32>
      %19 = vector.shape_cast %18 : vector<16xf32> to vector<16x1xf32>
      %cst_15 = arith.constant 3.200000e+01 : f32
      %20 = vector.broadcast %cst_15 : f32 to vector<16x1xf32>
      %21 = arith.divf %19, %20 : vector<16x1xf32>
      %22 = vector.broadcast %21 : vector<16x1xf32> to vector<16x32xf32>
      %23 = arith.subf %17, %22 : vector<16x32xf32>
      %24 = arith.mulf %23, %23 : vector<16x32xf32>
      %cst_16 = arith.constant dense<0.000000e+00> : vector<16xf32>
      %25 = vector.multi_reduction <add>, %24, %cst_16 [1] : vector<16x32xf32> to vector<16xf32>
      %26 = vector.shape_cast %25 : vector<16xf32> to vector<16x1xf32>
      %cst_17 = arith.constant 3.200000e+01 : f32
      %27 = vector.broadcast %cst_17 : f32 to vector<16x1xf32>
      %28 = arith.divf %26, %27 : vector<16x1xf32>
      %cst_18 = arith.constant 9.99999996E-13 : f32
      %29 = vector.broadcast %cst_18 : f32 to vector<16x1xf32>
      %30 = arith.addf %28, %29 : vector<16x1xf32>
      %31 = math.rsqrt %30 : vector<16x1xf32>
      %32 = vector.broadcast %31 : vector<16x1xf32> to vector<16x32xf32>
      %33 = arith.mulf %23, %32 : vector<16x32xf32>
      %c0_19 = arith.constant 0 : index
      %c0_20 = arith.constant 0 : index
      %34 = vector.load %arg6[%c0_19, %c0_20] : memref<1x32xf32, #tpu.memory_space<vmem>>, vector<1x32xf32>
      %35 = vector.broadcast %34 : vector<1x32xf32> to vector<16x32xf32>
      %36 = arith.mulf %33, %35 : vector<16x32xf32>
      %c0_21 = arith.constant 0 : index
      %c0_22 = arith.constant 0 : index
      %37 = vector.load %arg7[%c0_21, %c0_22] : memref<1x32xf32, #tpu.memory_space<vmem>>, vector<1x32xf32>
      %38 = vector.broadcast %37 : vector<1x32xf32> to vector<16x32xf32>
      %39 = arith.addf %36, %38 : vector<16x32xf32>
      %c0_23 = arith.constant 0 : index
      %c0_24 = arith.constant 0 : index
      %40 = vector.load %arg8[%c0_23, %c0_24] : memref<16x32xf32, #tpu.memory_space<vmem>>, vector<16x32xf32>
      tpu.vector_store %arg8[%c0_23, %c0_24], %39 {strides = array<i32>} : memref<16x32xf32, #tpu.memory_space<vmem>>, vector<16x32xf32>,
    } else {
    }
    return
  }
  func.func @transform_0(%arg0: i32, %arg1: i32) -> (i32, i32) {
    %c0_i32 = arith.constant 0 : i32
    return %arg0, %arg1 : i32, i32
  }
  func.func @transform_1(%arg0: i32, %arg1: i32) -> (i32, i32) {
    %c0_i32 = arith.constant 0 : i32
    %c0_i32_0 = arith.constant 0 : i32
    return %arg1, %c0_i32 : i32, i32
  }
  func.func @transform_2(%arg0: i32, %arg1: i32) -> (i32, i32) {
    %c0_i32 = arith.constant 0 : i32
    %c0_i32_0 = arith.constant 0 : i32
    %c0_i32_1 = arith.constant 0 : i32
    return %c0_i32, %c0_i32_0 : i32, i32
  }
  func.func @transform_3(%arg0: i32, %arg1: i32) -> (i32, i32) {
    %c0_i32 = arith.constant 0 : i32
    %c0_i32_0 = arith.constant 0 : i32
    return %arg0, %c0_i32 : i32, i32
  }
  func.func @transform_4(%arg0: i32, %arg1: i32) -> (i32, i32) {
    %c0_i32 = arith.constant 0 : i32
    %c0_i32_0 = arith.constant 0 : i32
    %c0_i32_1 = arith.constant 0 : i32
    return %c0_i32, %c0_i32_0 : i32, i32
  }
  func.func @transform_5(%arg0: i32, %arg1: i32) -> (i32, i32) {
    %c0_i32 = arith.constant 0 : i32
    %c0_i32_0 = arith.constant 0 : i32
    %c0_i32_1 = arith.constant 0 : i32
    return %c0_i32, %c0_i32_0 : i32, i32
  }
  func.func @transform_6(%arg0: i32, %arg1: i32) -> (i32, i32) {
    %c0_i32 = arith.constant 0 : i32
    %c0_i32_0 = arith.constant 0 : i32
    return %arg0, %c0_i32 : i32, i32
  }
}

</mosaic_0001>

<llo_original>
// kernel: tpu_custom_call.1
$region0: #{tpu_custom_call.1}
  #allocation0 [shape = 'u32[]', space=smem, size = 0x4, offset = 0x4, fixed_abs, tag = 'smem constant byte address 0x4 - core index']
  #allocation1 [shape = 'u32[72,128]{1,0:T(1,128)}', space=vmem, size = 0x9000, scoped, tag = 'internal scratch']
  #allocation2 [shape = 'f32[16,32]{1,0:T(8,128)}', space=vmem, size = 0x2000, scoped, tag = 'scratch operand']
  %s0 = inlined_call_operand.vmem [shape: f32[16,128], index: 0, kind: input, shape index: {}]
  %s1 = inlined_call_operand.vmem [shape: f32[128,32], index: 1, kind: input, shape index: {}]
  %s2 = inlined_call_operand.vmem [shape: f32[1,32], index: 2, kind: input, shape index: {}]
  %s3 = inlined_call_operand.vmem [shape: f32[16,32], index: 3, kind: input, shape index: {}]
  %s4 = inlined_call_operand.vmem [shape: f32[1,32], index: 4, kind: input, shape index: {}]
  %s5 = inlined_call_operand.vmem [shape: f32[1,32], index: 5, kind: input, shape index: {}]
  %s6 = inlined_call_operand.hbm [shape: f32[16,32], index: 6, kind: output, shape index: {}]
  %s7 = sld [smem:[#allocation0]]
  $region46: #{tpu_custom_call.1} parent=0
    _
  %s9 = ssub.s32 1, %s7
  %s10 = scalar_select 0, %s9, %s7
  $region1: #{tpu_custom_call.1} parent=0
    #allocation3 [shape = 'u8[8192]{0}', space=vmem, size = 0x2000, scoped, tag = 'output window, operand 0, single buffered']
    #allocation4 [shape = 's32[1]{0}', space=sflag, size = 0x4, scoped, tag = 'scoped memory for tpu_custom_call.1']
    %11 = vsyncpa [#allocation4], 0
    // Predicated region
    $region2: #{tpu_custom_call.1} parent=1 // pred_check
      _
    $region3: #{tpu_custom_call.1} parent=1 // pred_check_branch
      %13 = sbr.rel (0) target = $region5
    $region4: #{tpu_custom_call.1} parent=1 // pred_region
      _
    $region5: #{tpu_custom_call.1} parent=1 // pred_fallthru
      _
    // Predicated region
    $region6: #{tpu_custom_call.1} parent=1 // pred_check
      _
    $region7: #{tpu_custom_call.1} parent=1 // pred_check_branch
      %15 = sbr.rel (0) target = $region9
    $region8: #{tpu_custom_call.1} parent=1 // pred_region
      _
    $region9: #{tpu_custom_call.1} parent=1 // pred_fallthru
      _
    // Predicated region
    $region10: #{tpu_custom_call.1} parent=1 // pred_check
      _
    $region11: #{tpu_custom_call.1} parent=1 // pred_check_branch
      %17 = sbr.rel (0) target = $region13
    $region12: #{tpu_custom_call.1} parent=1 // pred_region
      _
    $region13: #{tpu_custom_call.1} parent=1 // pred_fallthru
      _
    // Predicated region
    $region14: #{tpu_custom_call.1} parent=1 // pred_check
      _
    $region15: #{tpu_custom_call.1} parent=1 // pred_check_branch
      %19 = sbr.rel (0) target = $region17
    $region16: #{tpu_custom_call.1} parent=1 // pred_region
      _
    $region17: #{tpu_custom_call.1} parent=1 // pred_fallthru
      _
    // Predicated region
    $region18: #{tpu_custom_call.1} parent=1 // pred_check
      _
    $region19: #{tpu_custom_call.1} parent=1 // pred_check_branch
      %21 = sbr.rel (0) target = $region21
    $region20: #{tpu_custom_call.1} parent=1 // pred_region
      _
    $region21: #{tpu_custom_call.1} parent=1 // pred_fallthru
      _
    // Predicated region
    $region22: #{tpu_custom_call.1} parent=1 // pred_check
      _
    $region23: #{tpu_custom_call.1} parent=1 // pred_check_branch
      %23 = sbr.rel (0) target = $region25
    $region24: #{tpu_custom_call.1} parent=1 // pred_region
      _
    $region25: #{tpu_custom_call.1} parent=1 // pred_fallthru
      _
    %v24 = vld [vmem:[%s0] sm:$0xff]
    %v25 = vld [vmem:[%s0 + $0x8] sm:$0xff]
    %v26 = vld [vmem:[%s1] sm:$0xff]
    %v27 = vld [vmem:[%s1 + $0x8] sm:$0xff]
    %v28 = vld [vmem:[%s1 + $0x10] sm:$0xff]
    %v29 = vld [vmem:[%s1 + $0x18] sm:$0xff]
    %v30 = vld [vmem:[%s1 + $0x20] sm:$0xff]
    %v31 = vld [vmem:[%s1 + $0x28] sm:$0xff]
    %v32 = vld [vmem:[%s1 + $0x30] sm:$0xff]
    %v33 = vld [vmem:[%s1 + $0x38] sm:$0xff]
    %v34 = vld [vmem:[%s1 + $0x40] sm:$0xff]
    %v35 = vld [vmem:[%s1 + $0x48] sm:$0xff]
    %v36 = vld [vmem:[%s1 + $0x50] sm:$0xff]
    %v37 = vld [vmem:[%s1 + $0x58] sm:$0xff]
    %v38 = vld [vmem:[%s1 + $0x60] sm:$0xff]
    %v39 = vld [vmem:[%s1 + $0x68] sm:$0xff]
    %v40 = vld [vmem:[%s1 + $0x70] sm:$0xff]
    %v41 = vld [vmem:[%s1 + $0x78] sm:$0xff]
    %42 = vmatpush.msra.mxu0 %v41
    %43 = vmatpush.msra.mxu0 %v40
    %44 = vmatpush.msra.mxu0 %v39
    %45 = vmatpush.msra.mxu0 %v38
    %46 = vmatpush.msra.mxu0 %v37
    %47 = vmatpush.msra.mxu0 %v36
    %48 = vmatpush.msra.mxu0 %v35
    %49 = vmatpush.msra.mxu0 %v34
    %50 = vmatpush.msra.mxu0 %v33
    %51 = vmatpush.msra.mxu0 %v32
    %52 = vmatpush.msra.mxu0 %v31
    %53 = vmatpush.msra.mxu0 %v30
    %54 = vmatpush.msra.mxu0 %v29
    %55 = vmatpush.msra.mxu0 %v28
    %56 = vmatpush.msra.mxu0 %v27
    %57 = vmatpush.msra.mxu0 %v26
    %58 = vmatmul.f32.gmra.mxu0 %v24
    %v59 = vpop.f32.mrf.mxu0
    %v60 = vadd.f32 0.0, %v59
    %61 = vmatmul.f32.gmra.mxu0 %v25
    %v62 = vpop.f32.mrf.mxu0
    %v63 = vadd.f32 0.0, %v62
    %64 = vdwg.mxu0
    %p65 = scmp.eq.s32.totalorder 0, 0
    // Predicated region
    $region26: #{tpu_custom_call.1} parent=1 // pred_check
      %p66 = pneg %p65
    $region27: #{tpu_custom_call.1} parent=1 // pred_check_branch
      %68 = sbr.rel (%p66) target = $region29
    $region28: #{tpu_custom_call.1} parent=1 // pred_region
      %vm69 = vcmask 261120
      %70 = vst.msk [vmem:[#allocation2] sm:$0xff] %vm69, %v60
      %71 = vst.msk [vmem:[#allocation2 + $0x8] sm:$0xff] %vm69, %v63
    $region29: #{tpu_custom_call.1} parent=1 // pred_fallthru
      _
    %p72 = scmp.gt.s32.totalorder 0, 0
    // Predicated region
    $region30: #{tpu_custom_call.1} parent=1 // pred_check
      %p73 = pneg %p72
    $region31: #{tpu_custom_call.1} parent=1 // pred_check_branch
      %75 = sbr.rel (%p73) target = $region33
    $region32: #{tpu_custom_call.1} parent=1 // pred_region
      %v76 = vld [vmem:[#allocation2] sm:$0xff]
      %v77 = vld [vmem:[#allocation2 + $0x8] sm:$0xff]
      %v78 = vadd.f32 %v76, %v60
      %v79 = vadd.f32 %v77, %v63
      %vm80 = vcmask 261120
      %81 = vst.msk [vmem:[#allocation2] sm:$0xff] %vm80, %v78
      %82 = vst.msk [vmem:[#allocation2 + $0x8] sm:$0xff] %vm80, %v79
    $region33: #{tpu_custom_call.1} parent=1 // pred_fallthru
      _
    // Predicated region
    $region34: #{tpu_custom_call.1} parent=1 // pred_check
      %p83 = pneg %p65
    $region35: #{tpu_custom_call.1} parent=1 // pred_check_branch
      %85 = sbr.rel (%p83) target = $region37
    $region36: #{tpu_custom_call.1} parent=1 // pred_region
      %v86 = vld [vmem:[#allocation2] sm:$0xff]
      %v87 = vld [vmem:[#allocation2 + $0x8] sm:$0xff]
      %v88 = vld [vmem:[%s2] sm:$0x1]
      %v90 = vperm.slane %v88, 0
      %v92 = vadd.f32 %v86, %v90
      %v93 = vadd.f32 %v87, %v90
      %v94 = vld [vmem:[%s3] sm:$0xff]
      %v95 = vld [vmem:[%s3 + $0x8] sm:$0xff]
      %v96 = vadd.f32 %v92, %v94
      %v97 = vadd.f32 %v93, %v95
      %vm98 = vcmask 261120
      %v99 = vsel %vm98, %v96, 0.0
      %100 = vadd.xlane.f32.xlu0 %v99
      %v101 = vpop.xlane.xlu0 %100
      %v102 = vsel %vm98, %v97, 0.0
      %103 = vadd.xlane.f32.xlu0 %v102
      %v104 = vpop.xlane.xlu0 %103
      %v105 = vrcp.pop 32.0
      %v106 = vmul.f32 32.0, %v105
      %v107 = vsub.f32 1.0, %v106
      %v108 = vmul.f32 %v105, %v107
      %v109 = vadd.f32 %v105, %v108
      %vm110 = vweird.f32 %v105
      %v111 = vsel %vm110, %v105, %v109
      %v112 = vmul.f32 %v101, %v111
      %v113 = vmul.f32 %v104, %v111
      %v114 = vsub.f32 %v96, %v112
      %v115 = vsub.f32 %v97, %v113
      %v116 = vmul.f32 %v114, %v114
      %v117 = vmul.f32 %v115, %v115
      %v118 = vsel %vm98, %v116, 0.0
      %119 = vadd.xlane.f32.xlu0 %v118
      %v120 = vpop.xlane.xlu0 %119
      %v121 = vsel %vm98, %v117, 0.0
      %122 = vadd.xlane.f32.xlu0 %v121
      %v123 = vpop.xlane.xlu0 %122
      %v124 = vmul.f32 %v120, %v111
      %v125 = vmul.f32 %v123, %v111
      %v126 = vadd.f32 %v124, 1e-12
      %v127 = vadd.f32 %v125, 1e-12
      %v128 = vrsqrt.pop %v126
      %v129 = vmul.f32 %v128, %v126
      %v130 = vmul.f32 %v129, %v128
      %v131 = vmul.f32 0.5, %v130
      %v132 = vsub.f32 1.5, %v131
      %v133 = vmul.f32 %v128, %v132
      %vm134 = vweird.f32 %v126
      %vm135 = vweird.f32 %v128
      %vm136 = vmor %vm134, %vm135
      %v137 = vsel %vm136, %v128, %v133
      %v138 = vrsqrt.pop %v127
      %v139 = vmul.f32 %v138, %v127
      %v140 = vmul.f32 %v139, %v138
      %v141 = vmul.f32 0.5, %v140
      %v142 = vsub.f32 1.5, %v141
      %v143 = vmul.f32 %v138, %v142
      %vm144 = vweird.f32 %v127
      %vm145 = vweird.f32 %v138
      %vm146 = vmor %vm144, %vm145
      %v147 = vsel %vm146, %v138, %v143
      %v148 = vmul.f32 %v114, %v137
      %v149 = vmul.f32 %v115, %v147
      %v150 = vld [vmem:[%s4] sm:$0x1]
      %v152 = vperm.slane %v150, 0
      %v154 = vmul.f32 %v148, %v152
      %v155 = vmul.f32 %v149, %v152
      %v156 = vld [vmem:[%s5] sm:$0x1]
      %v158 = vperm.slane %v156, 0
      %v160 = vadd.f32 %v154, %v158
      %v161 = vadd.f32 %v155, %v158
      %162 = vst.msk [vmem:[#allocation3] sm:$0xff] %vm98, %v160
      %163 = vst.msk [vmem:[#allocation3 + $0x8] sm:$0xff] %vm98, %v161
    $region37: #{tpu_custom_call.1} parent=1 // pred_fallthru
      _
    // Predicated region
    $region38: #{tpu_custom_call.1} parent=1 // pred_check
      _
    $region39: #{tpu_custom_call.1} parent=1 // pred_check_branch
      %165 = sbr.rel (0) target = $region41
    $region40: #{tpu_custom_call.1} parent=1 // pred_region
      %167 = vsyncadd [#allocation4], 0
      %s168 = sshll.u32 [#allocation3], 4
      %s169 = int_to_ptr.vmem [resolvable:$true] %s168
      %s170 = sshll.u32 %s6, 4
      %s171 = int_to_ptr.hbm [resolvable:$true] %s170
      %176 = dma.vmem_to_hbm [thread:$0]  %s169, 256, %s171, [#allocation4], 128, 128, 8
    $region41: #{tpu_custom_call.1} parent=1 // pred_fallthru
      _
    // Predicated region
    $region42: #{tpu_custom_call.1} parent=1 // pred_check
      _
    $region43: #{tpu_custom_call.1} parent=1 // pred_check_branch
      %178 = sbr.rel (0) target = $region45
    $region44: #{tpu_custom_call.1} parent=1 // pred_region
      %180 = dma.done [#allocation4], 256
    $region45: #{tpu_custom_call.1} parent=1 // pred_fallthru
      _
    %181 = vsyncpa [#allocation4], 1

</llo_original>
